<compile_context>
chip_gen: v7x
topology: tpu7x:2x2x1
jax: 0.10.0
libtpu: 0.0.40
codegen_flags: <defaults>
</compile_context>

<pallas_src>
import functools

import jax
import jax.numpy as jnp
from jax.experimental import pallas as pl
from jax.experimental.pallas import tpu as pltpu


def _round_up(n, m):
    return ((n + m - 1) // m) * m


def sampler_kernel(x_ref, eps_ref, w1_ref, b1_ref, wh_ref, bh_ref,
                   z_ref, kld_ref):
    fp = z_ref.shape[-1]                       # padded feature width (mult of 128)

    # encode = relu(x @ W1 + b1)   (bf16 operands, f32 accumulate)
    h = jnp.dot(x_ref[...], w1_ref[...], preferred_element_type=jnp.float32)
    h = jnp.maximum(h + b1_ref[...], 0.0)      # (Bt, Hp) f32

    # fused heads: [mu | logvar] = encode @ [Wmu | Wvar] + [bmu | bvar]
    heads = jnp.dot(h.astype(wh_ref.dtype), wh_ref[...],
                    preferred_element_type=jnp.float32) + bh_ref[...]
    mu = heads[:, :fp]                         # lane-aligned static slices
    logvar = heads[:, fp:]

    # reparameterization + KLD; exp(logvar) reused as std*std (one EUP op)
    std = jnp.exp(0.5 * logvar)
    eps = eps_ref[...]
    z_ref[...] = eps * std + mu
    kld_ref[...] = 1.0 + logvar - mu * mu - std * std


@functools.partial(jax.jit, static_argnames=("block_b",))
def sampler_forward(x, params, eps, *, block_b=256):
    B, F = x.shape
    H = params["w1"].shape[1]

    Fp = _round_up(F, 128)
    Hp = _round_up(H, 128)
    block_b = min(block_b, _round_up(B, 8))
    Bp = _round_up(B, block_b)

    bf16 = jnp.bfloat16
    f32 = jnp.float32

    # Zero-padded, lane-dense operands (bf16 for MXU operands, f32 biases/eps).
    xp = jnp.zeros((Bp, Fp), bf16).at[:B, :F].set(x.astype(bf16))
    epsp = jnp.zeros((Bp, Fp), f32).at[:B, :F].set(eps.astype(f32))
    w1p = jnp.zeros((Fp, Hp), bf16).at[:F, :H].set(params["w1"].astype(bf16))
    b1p = jnp.zeros((1, Hp), f32).at[:, :H].set(params["b1"].astype(f32))

    # Fused mu|logvar head weight / bias: (Hp, 2*Fp), (1, 2*Fp).
    whp = jnp.zeros((Hp, 2 * Fp), bf16)
    whp = whp.at[:H, :F].set(params["wmu"].astype(bf16))
    whp = whp.at[:H, Fp:Fp + F].set(params["wvar"].astype(bf16))
    bhp = jnp.zeros((1, 2 * Fp), f32)
    bhp = bhp.at[:, :F].set(params["bmu"].astype(f32))
    bhp = bhp.at[:, Fp:Fp + F].set(params["bvar"].astype(f32))

    grid = (Bp // block_b,)

    flops = 2 * Bp * Fp * Hp + 2 * Bp * Hp * (2 * Fp)
    bytes_accessed = (xp.size * 2 + epsp.size * 4 + w1p.size * 2 + b1p.size * 4
                      + whp.size * 2 + bhp.size * 4 + 2 * Bp * Fp * 4)

    z_pad, kld_pad = pl.pallas_call(
        sampler_kernel,
        out_shape=(jax.ShapeDtypeStruct((Bp, Fp), f32),
                   jax.ShapeDtypeStruct((Bp, Fp), f32)),
        grid_spec=pltpu.PrefetchScalarGridSpec(
            num_scalar_prefetch=0,
            grid=grid,
            in_specs=[
                pl.BlockSpec((block_b, Fp), lambda i: (i, 0)),   # x  (tiled)
                pl.BlockSpec((block_b, Fp), lambda i: (i, 0)),   # eps (tiled)
                pl.BlockSpec((Fp, Hp), lambda i: (0, 0)),        # W1 (resident)
                pl.BlockSpec((1, Hp), lambda i: (0, 0)),         # b1 (resident)
                pl.BlockSpec((Hp, 2 * Fp), lambda i: (0, 0)),    # Wmu|Wvar
                pl.BlockSpec((1, 2 * Fp), lambda i: (0, 0)),     # bmu|bvar
            ],
            out_specs=[
                pl.BlockSpec((block_b, Fp), lambda i: (i, 0)),   # z
                pl.BlockSpec((block_b, Fp), lambda i: (i, 0)),   # kld
            ],
        ),
        compiler_params=pltpu.CompilerParams(
            dimension_semantics=("parallel",),      # megacore split on v7x
            vmem_limit_bytes=64 * 1024 * 1024,      # fits v7x's 64 MiB VMEM
        ),
        cost_estimate=pl.CostEstimate(
            flops=flops,
            transcendentals=Bp * Fp,
            bytes_accessed=bytes_accessed,
        ),
    )(xp, epsp, w1p, b1p, whp, bhp)

    # Strip padding; match torch.cat([eps*std+mu, kld], 1).
    return jnp.concatenate([z_pad[:B, :F], kld_pad[:B, :F]], axis=1)


def init_params(key, feature_size, hidden_size):
    ks = jax.random.split(key, 6)
    scale1 = 1.0 / jnp.sqrt(feature_size)
    scale2 = 1.0 / jnp.sqrt(hidden_size)
    # Weights stored as (in, out) — transposed relative to torch.nn.Linear.
    return {
        "w1":   jax.random.uniform(ks[0], (feature_size, hidden_size),
                                   jnp.float32, -scale1, scale1),
        "b1":   jax.random.uniform(ks[1], (1, hidden_size),
                                   jnp.float32, -scale1, scale1),
        "wmu":  jax.random.uniform(ks[2], (hidden_size, feature_size),
                                   jnp.float32, -scale2, scale2),
        "bmu":  jax.random.uniform(ks[3], (1, feature_size),
                                   jnp.float32, -scale2, scale2),
        "wvar": jax.random.uniform(ks[4], (hidden_size, feature_size),
                                   jnp.float32, -scale2, scale2),
        "bvar": jax.random.uniform(ks[5], (1, feature_size),
                                   jnp.float32, -scale2, scale2),
    }


def sampler_reference(x, params, eps):
    # Pure-JAX reference of the PyTorch forward (probabilistic=True),
    # mirroring the kernel's bf16 matmul-operand rounding (f32 accumulation).
    bf16, f32 = jnp.bfloat16, jnp.float32
    xb = x.astype(bf16).astype(f32)
    w1 = params["w1"].astype(bf16).astype(f32)
    wmu = params["wmu"].astype(bf16).astype(f32)
    wvar = params["wvar"].astype(bf16).astype(f32)

    h = jnp.maximum(xb @ w1 + params["b1"], 0.0)
    hb = h.astype(bf16).astype(f32)
    mu = hb @ wmu + params["bmu"]
    logvar = hb @ wvar + params["bvar"]
    std = jnp.exp(0.5 * logvar)
    z = eps * std + mu
    kld = 1.0 + logvar - mu * mu - std * std
    return jnp.concatenate([z, kld], axis=1)


if __name__ == "__main__":
    B, FEATURE, HIDDEN = 8, 32, 64

    key = jax.random.PRNGKey(0)
    k_param, k_x, k_eps = jax.random.split(key, 3)

    params = init_params(k_param, FEATURE, HIDDEN)
    x = jax.random.normal(k_x, (B, FEATURE), dtype=jnp.float32)
    # torch.randn_like(std) equivalent, generated deterministically host-side.
    eps = jax.random.normal(k_eps, (B, FEATURE), dtype=jnp.float32)

    out = sampler_forward(x, params, eps)
    out = jax.block_until_ready(out)

    ref = sampler_reference(x, params, eps)
    assert out.shape == (B, 2 * FEATURE)
    assert jnp.allclose(out, ref, atol=5e-3, rtol=5e-3), "mismatch vs reference"

    print("KERNEL_OK")
</pallas_src>

<mosaic_0001>
module attributes {stable_mosaic.version = 11 : i64} {
  func.func @sampler_kernel(%arg0: i32, %arg1: memref<8x128xbf16, #tpu.memory_space<vmem>>, %arg2: memref<8x128xf32, #tpu.memory_space<vmem>>, %arg3: memref<128x128xbf16, #tpu.memory_space<vmem>>, %arg4: memref<1x128xf32, #tpu.memory_space<vmem>>, %arg5: memref<128x256xbf16, #tpu.memory_space<vmem>>, %arg6: memref<1x256xf32, #tpu.memory_space<vmem>>, %arg7: memref<8x128xf32, #tpu.memory_space<vmem>>, %arg8: memref<8x128xf32, #tpu.memory_space<vmem>>) attributes {dimension_semantics = [#tpu.dimension_semantics<parallel>], iteration_bounds = array<i64: 1>, scalar_prefetch = 0 : i64, scratch_operands = 0 : i64, tpu.core_type = #tpu.core_type<tc>, window_params = [{transform_indices = @transform_0, window_bounds = array<i64: 8, 128>}, {transform_indices = @transform_1, window_bounds = array<i64: 8, 128>}, {pipeline_mode = #tpu.pipeline_mode<synchronous>, transform_indices = @transform_2, window_bounds = array<i64: 128, 128>}, {pipeline_mode = #tpu.pipeline_mode<synchronous>, transform_indices = @transform_3, window_bounds = array<i64: 1, 128>}, {pipeline_mode = #tpu.pipeline_mode<synchronous>, transform_indices = @transform_4, window_bounds = array<i64: 128, 256>}, {pipeline_mode = #tpu.pipeline_mode<synchronous>, transform_indices = @transform_5, window_bounds = array<i64: 1, 256>}, {transform_indices = @transform_6, window_bounds = array<i64: 8, 128>}, {transform_indices = @transform_7, window_bounds = array<i64: 8, 128>}]} {
    %c0 = arith.constant 0 : index
    %c0_0 = arith.constant 0 : index
    %0 = vector.load %arg1[%c0, %c0_0] : memref<8x128xbf16, #tpu.memory_space<vmem>>, vector<8x128xbf16>
    %c0_1 = arith.constant 0 : index
    %c0_2 = arith.constant 0 : index
    %1 = vector.load %arg3[%c0_1, %c0_2] : memref<128x128xbf16, #tpu.memory_space<vmem>>, vector<128x128xbf16>
    %cst = arith.constant dense<0.000000e+00> : vector<8x128xf32>
    %2 = tpu.matmul %0, %1, %cst {dimension_numbers = #tpu.dot_dimension_numbers<[1], [0], [0], [1], [0, 0, 1, 1], [], []>} : vector<8x128xbf16>, vector<128x128xbf16>, vector<8x128xf32> -> vector<8x128xf32>
    %c0_3 = arith.constant 0 : index
    %c0_4 = arith.constant 0 : index
    %3 = vector.load %arg4[%c0_3, %c0_4] : memref<1x128xf32, #tpu.memory_space<vmem>>, vector<1x128xf32>
    %4 = vector.broadcast %3 : vector<1x128xf32> to vector<8x128xf32>
    %5 = arith.addf %2, %4 : vector<8x128xf32>
    %cst_5 = arith.constant 0.000000e+00 : f32
    %6 = vector.broadcast %cst_5 : f32 to vector<8x128xf32>
    %7 = arith.maximumf %5, %6 : vector<8x128xf32>
    %8 = arith.truncf %7 : vector<8x128xf32> to vector<8x128xbf16>
    %c0_6 = arith.constant 0 : index
    %c0_7 = arith.constant 0 : index
    %9 = vector.load %arg5[%c0_6, %c0_7] : memref<128x256xbf16, #tpu.memory_space<vmem>>, vector<128x256xbf16>
    %cst_8 = arith.constant dense<0.000000e+00> : vector<8x256xf32>
    %10 = tpu.matmul %8, %9, %cst_8 {dimension_numbers = #tpu.dot_dimension_numbers<[1], [0], [0], [1], [0, 0, 1, 1], [], []>} : vector<8x128xbf16>, vector<128x256xbf16>, vector<8x256xf32> -> vector<8x256xf32>
    %c0_9 = arith.constant 0 : index
    %c0_10 = arith.constant 0 : index
    %11 = vector.load %arg6[%c0_9, %c0_10] : memref<1x256xf32, #tpu.memory_space<vmem>>, vector<1x256xf32>
    %12 = vector.broadcast %11 : vector<1x256xf32> to vector<8x256xf32>
    %13 = arith.addf %10, %12 : vector<8x256xf32>
    %14 = vector.extract_strided_slice %13 {offsets = [0, 0], sizes = [8, 128], strides = [1, 1]} : vector<8x256xf32> to vector<8x128xf32>
    %15 = vector.extract_strided_slice %13 {offsets = [0, 128], sizes = [8, 128], strides = [1, 1]} : vector<8x256xf32> to vector<8x128xf32>
    %cst_11 = arith.constant 5.000000e-01 : f32
    %16 = vector.broadcast %cst_11 : f32 to vector<8x128xf32>
    %17 = arith.mulf %16, %15 : vector<8x128xf32>
    %18 = math.exp %17 : vector<8x128xf32>
    %c0_12 = arith.constant 0 : index
    %c0_13 = arith.constant 0 : index
    %19 = vector.load %arg2[%c0_12, %c0_13] : memref<8x128xf32, #tpu.memory_space<vmem>>, vector<8x128xf32>
    %20 = arith.mulf %19, %18 : vector<8x128xf32>
    %21 = arith.addf %20, %14 : vector<8x128xf32>
    %c0_14 = arith.constant 0 : index
    %c0_15 = arith.constant 0 : index
    %22 = vector.load %arg7[%c0_14, %c0_15] : memref<8x128xf32, #tpu.memory_space<vmem>>, vector<8x128xf32>
    tpu.vector_store %arg7[%c0_14, %c0_15], %21 {strides = array<i32>} : memref<8x128xf32, #tpu.memory_space<vmem>>, vector<8x128xf32>,
    %cst_16 = arith.constant 1.000000e+00 : f32
    %23 = vector.broadcast %cst_16 : f32 to vector<8x128xf32>
    %24 = arith.addf %23, %15 : vector<8x128xf32>
    %25 = arith.mulf %14, %14 : vector<8x128xf32>
    %26 = arith.subf %24, %25 : vector<8x128xf32>
    %27 = arith.mulf %18, %18 : vector<8x128xf32>
    %28 = arith.subf %26, %27 : vector<8x128xf32>
    %c0_17 = arith.constant 0 : index
    %c0_18 = arith.constant 0 : index
    %29 = vector.load %arg8[%c0_17, %c0_18] : memref<8x128xf32, #tpu.memory_space<vmem>>, vector<8x128xf32>
    tpu.vector_store %arg8[%c0_17, %c0_18], %28 {strides = array<i32>} : memref<8x128xf32, #tpu.memory_space<vmem>>, vector<8x128xf32>,
    return
  }
  func.func @transform_0(%arg0: i32) -> (i32, i32) {
    %c0_i32 = arith.constant 0 : i32
    %c0_i32_0 = arith.constant 0 : i32
    return %arg0, %c0_i32 : i32, i32
  }
  func.func @transform_1(%arg0: i32) -> (i32, i32) {
    %c0_i32 = arith.constant 0 : i32
    %c0_i32_0 = arith.constant 0 : i32
    return %arg0, %c0_i32 : i32, i32
  }
  func.func @transform_2(%arg0: i32) -> (i32, i32) {
    %c0_i32 = arith.constant 0 : i32
    %c0_i32_0 = arith.constant 0 : i32
    %c0_i32_1 = arith.constant 0 : i32
    return %c0_i32, %c0_i32_0 : i32, i32
  }
  func.func @transform_3(%arg0: i32) -> (i32, i32) {
    %c0_i32 = arith.constant 0 : i32
    %c0_i32_0 = arith.constant 0 : i32
    %c0_i32_1 = arith.constant 0 : i32
    return %c0_i32, %c0_i32_0 : i32, i32
  }
  func.func @transform_4(%arg0: i32) -> (i32, i32) {
    %c0_i32 = arith.constant 0 : i32
    %c0_i32_0 = arith.constant 0 : i32
    %c0_i32_1 = arith.constant 0 : i32
    return %c0_i32, %c0_i32_0 : i32, i32
  }
  func.func @transform_5(%arg0: i32) -> (i32, i32) {
    %c0_i32 = arith.constant 0 : i32
    %c0_i32_0 = arith.constant 0 : i32
    %c0_i32_1 = arith.constant 0 : i32
    return %c0_i32, %c0_i32_0 : i32, i32
  }
  func.func @transform_6(%arg0: i32) -> (i32, i32) {
    %c0_i32 = arith.constant 0 : i32
    %c0_i32_0 = arith.constant 0 : i32
    return %arg0, %c0_i32 : i32, i32
  }
  func.func @transform_7(%arg0: i32) -> (i32, i32) {
    %c0_i32 = arith.constant 0 : i32
    %c0_i32_0 = arith.constant 0 : i32
    return %arg0, %c0_i32 : i32, i32
  }
}

</mosaic_0001>

<llo_original>
// kernel: sampler_forward.1
$region0: #{sampler_forward.1}
  #allocation0 [shape = 'u32[]', space=smem, size = 0x4, offset = 0x4, fixed_abs, tag = 'smem constant byte address 0x4 - core index']
  #allocation1 [shape = 'u32[144,128]{1,0:T(1,128)}', space=vmem, size = 0x12000, scoped, tag = 'internal scratch']
  %s0 = inlined_call_operand.hbm [shape: bf16[8,128], index: 0, kind: input, shape index: {}]
  %s1 = inlined_call_operand.hbm [shape: f32[8,128], index: 1, kind: input, shape index: {}]
  %s2 = inlined_call_operand.hbm [shape: bf16[128,128], index: 2, kind: input, shape index: {}]
  %s3 = inlined_call_operand.hbm [shape: f32[1,128], index: 3, kind: input, shape index: {}]
  %s4 = inlined_call_operand.hbm [shape: bf16[128,256], index: 4, kind: input, shape index: {}]
  %s5 = inlined_call_operand.hbm [shape: f32[1,256], index: 5, kind: input, shape index: {}]
  %s6 = inlined_call_operand.hbm [shape: f32[8,128], index: 6, kind: output, shape index: {0}]
  %s7 = inlined_call_operand.hbm [shape: f32[8,128], index: 7, kind: output, shape index: {1}]
  %8 = xla_tuple %s6, %s7
  %s9 = sld [smem:[#allocation0]]
  $region66: #{sampler_forward.1} parent=0
    _
  %s11 = ssub.s32 1, %s9
  %s12 = scalar_select 0, %s11, %s9
  $region1: #{sampler_forward.1} parent=0
    #allocation2 [shape = 'u8[2048]{0}', space=vmem, size = 0x800, scoped, tag = 'input window, operand 0, single buffered']
    #allocation3 [shape = 's32[1]{0}', space=sflag, size = 0x4, scoped, tag = 'scoped memory for sampler_forward.1']
    #allocation4 [shape = 's32[1]{0}', space=sflag, size = 0x4, scoped, tag = 'scoped memory for sampler_forward.1']
    #allocation5 [shape = 'u8[4096]{0}', space=vmem, size = 0x1000, scoped, tag = 'input window, operand 1, single buffered']
    #allocation6 [shape = 's32[1]{0}', space=sflag, size = 0x4, scoped, tag = 'scoped memory for sampler_forward.1']
    #allocation7 [shape = 'u8[32768]{0}', space=vmem, size = 0x8000, scoped, tag = 'input window, operand 2, single buffered']
    #allocation8 [shape = 'u8[512]{0}', space=vmem, size = 0x400, scoped, tag = 'input window, operand 3, single buffered']
    #allocation9 [shape = 's32[1]{0}', space=sflag, size = 0x4, scoped, tag = 'scoped memory for sampler_forward.1']
    #allocation10 [shape = 'u8[65536]{0}', space=vmem, size = 0x10000, scoped, tag = 'input window, operand 4, single buffered']
    #allocation11 [shape = 'u8[1024]{0}', space=vmem, size = 0x400, scoped, tag = 'input window, operand 5, single buffered']
    #allocation12 [shape = 's32[1]{0}', space=sflag, size = 0x4, scoped, tag = 'scoped memory for sampler_forward.1']
    #allocation13 [shape = 'u8[4096]{0}', space=vmem, size = 0x1000, scoped, tag = 'output window, operand 0, single buffered']
    #allocation14 [shape = 'u8[4096]{0}', space=vmem, size = 0x1000, scoped, tag = 'output window, operand 1, single buffered']
    #allocation15 [shape = 's32[1]{0}', space=sflag, size = 0x4, scoped, tag = 'scoped memory for sampler_forward.1']
    %13 = vsyncpa [#allocation3], 0
    %14 = vsyncpa [#allocation6], 0
    %15 = vsyncpa [#allocation9], 0
    %16 = vsyncpa [#allocation12], 0
    %17 = vsyncpa [#allocation4], 0
    %18 = vsyncpa [#allocation15], 0
    // Predicated region
    $region2: #{sampler_forward.1} parent=1 // pred_check
      _
    $region3: #{sampler_forward.1} parent=1 // pred_check_branch
      %20 = sbr.rel (0) target = $region5
    $region4: #{sampler_forward.1} parent=1 // pred_region
      %s22 = ssub.s32 64, 64
      %23 = vsyncadd [#allocation3], %s22
      %s25 = sshll.u32 [#allocation2], 4
      %s26 = int_to_ptr.vmem [resolvable:$true] %s25
      %28 = dma.hbm_to_vmem [thread:$0]  %s0, 64, %s26, [#allocation3]
    $region5: #{sampler_forward.1} parent=1 // pred_fallthru
      _
    // Predicated region
    $region6: #{sampler_forward.1} parent=1 // pred_check
      _
    $region7: #{sampler_forward.1} parent=1 // pred_check_branch
      %30 = sbr.rel (0) target = $region9
    $region8: #{sampler_forward.1} parent=1 // pred_region
      %s32 = ssub.s32 128, 128
      %33 = vsyncadd [#allocation6], %s32
      %s35 = sshll.u32 [#allocation5], 4
      %s36 = int_to_ptr.vmem [resolvable:$true] %s35
      %38 = dma.hbm_to_vmem [thread:$0]  %s1, 128, %s36, [#allocation6]
    $region9: #{sampler_forward.1} parent=1 // pred_fallthru
      _
    // Predicated region
    $region10: #{sampler_forward.1} parent=1 // pred_check
      _
    $region11: #{sampler_forward.1} parent=1 // pred_check_branch
      %40 = sbr.rel (0) target = $region13
    $region12: #{sampler_forward.1} parent=1 // pred_region
      %s42 = ssub.s32 1024, 1024
      %43 = vsyncadd [#allocation6], %s42
      %s44 = sshll.u32 [#allocation7], 4
      %s45 = int_to_ptr.vmem [resolvable:$true] %s44
      %50 = dma.hbm_to_vmem [thread:$0]  %s2, 1024, %s45, [#allocation6], 64, 64, 4
    $region13: #{sampler_forward.1} parent=1 // pred_fallthru
      _
    // Predicated region
    $region14: #{sampler_forward.1} parent=1 // pred_check
      _
    $region15: #{sampler_forward.1} parent=1 // pred_check_branch
      %52 = sbr.rel (0) target = $region17
    $region16: #{sampler_forward.1} parent=1 // pred_region
      %s54 = ssub.s32 16, 16
      %55 = vsyncadd [#allocation9], %s54
      %s57 = sshll.u32 [#allocation8], 4
      %s58 = int_to_ptr.vmem [resolvable:$true] %s57
      %60 = dma.hbm_to_vmem [thread:$0]  %s3, 16, %s58, [#allocation9]
    $region17: #{sampler_forward.1} parent=1 // pred_fallthru
      _
    // Predicated region
    $region18: #{sampler_forward.1} parent=1 // pred_check
      _
    $region19: #{sampler_forward.1} parent=1 // pred_check_branch
      %62 = sbr.rel (0) target = $region21
    $region20: #{sampler_forward.1} parent=1 // pred_region
      %s64 = ssub.s32 2048, 2048
      %65 = vsyncadd [#allocation9], %s64
      %s66 = sshll.u32 [#allocation10], 4
      %s67 = int_to_ptr.vmem [resolvable:$true] %s66
      %72 = dma.hbm_to_vmem [thread:$0]  %s4, 2048, %s67, [#allocation9], 128, 128, 8
    $region21: #{sampler_forward.1} parent=1 // pred_fallthru
      _
    // Predicated region
    $region22: #{sampler_forward.1} parent=1 // pred_check
      _
    $region23: #{sampler_forward.1} parent=1 // pred_check_branch
      %74 = sbr.rel (0) target = $region25
    $region24: #{sampler_forward.1} parent=1 // pred_region
      %s76 = ssub.s32 32, 32
      %77 = vsyncadd [#allocation12], %s76
      %s79 = sshll.u32 [#allocation11], 4
      %s80 = int_to_ptr.vmem [resolvable:$true] %s79
      %82 = dma.hbm_to_vmem [thread:$0]  %s5, 32, %s80, [#allocation12]
    $region25: #{sampler_forward.1} parent=1 // pred_fallthru
      _
    // Predicated region
    $region26: #{sampler_forward.1} parent=1 // pred_check
      _
    $region27: #{sampler_forward.1} parent=1 // pred_check_branch
      %84 = sbr.rel (0) target = $region29
    $region28: #{sampler_forward.1} parent=1 // pred_region
      %85 = dma.done [#allocation3], 64
    $region29: #{sampler_forward.1} parent=1 // pred_fallthru
      _
    // Predicated region
    $region30: #{sampler_forward.1} parent=1 // pred_check
      _
    $region31: #{sampler_forward.1} parent=1 // pred_check_branch
      %87 = sbr.rel (0) target = $region33
    $region32: #{sampler_forward.1} parent=1 // pred_region
      %88 = dma.done [#allocation6], 128
    $region33: #{sampler_forward.1} parent=1 // pred_fallthru
      _
    // Predicated region
    $region34: #{sampler_forward.1} parent=1 // pred_check
      _
    $region35: #{sampler_forward.1} parent=1 // pred_check_branch
      %90 = sbr.rel (0) target = $region37
    $region36: #{sampler_forward.1} parent=1 // pred_region
      %91 = dma.done [#allocation6], 1024
    $region37: #{sampler_forward.1} parent=1 // pred_fallthru
      _
    // Predicated region
    $region38: #{sampler_forward.1} parent=1 // pred_check
      _
    $region39: #{sampler_forward.1} parent=1 // pred_check_branch
      %93 = sbr.rel (0) target = $region41
    $region40: #{sampler_forward.1} parent=1 // pred_region
      %94 = dma.done [#allocation9], 16
    $region41: #{sampler_forward.1} parent=1 // pred_fallthru
      _
    // Predicated region
    $region42: #{sampler_forward.1} parent=1 // pred_check
      _
    $region43: #{sampler_forward.1} parent=1 // pred_check_branch
      %96 = sbr.rel (0) target = $region45
    $region44: #{sampler_forward.1} parent=1 // pred_region
      %97 = dma.done [#allocation9], 2048
    $region45: #{sampler_forward.1} parent=1 // pred_fallthru
      _
    // Predicated region
    $region46: #{sampler_forward.1} parent=1 // pred_check
      _
    $region47: #{sampler_forward.1} parent=1 // pred_check_branch
      %99 = sbr.rel (0) target = $region49
    $region48: #{sampler_forward.1} parent=1 // pred_region
      %100 = dma.done [#allocation12], 32
    $region49: #{sampler_forward.1} parent=1 // pred_fallthru
      _
    %v102 = vld [vmem:[#allocation2] sm:$0xf]
    %v103 = vld [vmem:[#allocation7] sm:$0xf]
    %v104 = vld [vmem:[#allocation7 + $0x4] sm:$0xf]
    %v105 = vld [vmem:[#allocation7 + $0x8] sm:$0xf]
    %v106 = vld [vmem:[#allocation7 + $0xc] sm:$0xf]
    %v107 = vld [vmem:[#allocation7 + $0x10] sm:$0xf]
    %v108 = vld [vmem:[#allocation7 + $0x14] sm:$0xf]
    %v109 = vld [vmem:[#allocation7 + $0x18] sm:$0xf]
    %v110 = vld [vmem:[#allocation7 + $0x1c] sm:$0xf]
    %v111 = vld [vmem:[#allocation7 + $0x20] sm:$0xf]
    %v112 = vld [vmem:[#allocation7 + $0x24] sm:$0xf]
    %v113 = vld [vmem:[#allocation7 + $0x28] sm:$0xf]
    %v114 = vld [vmem:[#allocation7 + $0x2c] sm:$0xf]
    %v115 = vld [vmem:[#allocation7 + $0x30] sm:$0xf]
    %v116 = vld [vmem:[#allocation7 + $0x34] sm:$0xf]
    %v117 = vld [vmem:[#allocation7 + $0x38] sm:$0xf]
    %v118 = vld [vmem:[#allocation7 + $0x3c] sm:$0xf]
    %v119 = vld [vmem:[#allocation8] sm:$0x1]
    %v121 = vlaneseq
    %v122 = vshrl.u32 %v121, 7
    %v123 = vsub.s32 0, %v122
    %v124 = vrot.slane %v119, %v123
    %v142 = vunpack.c.l.b16 %v103
    %v143 = vunpack.c.l.b16 %v104
    %v144 = vunpack.c.l.b16 %v105
    %v145 = vunpack.c.l.b16 %v106
    %v146 = vunpack.c.l.b16 %v107
    %v147 = vunpack.c.l.b16 %v108
    %v148 = vunpack.c.l.b16 %v109
    %v149 = vunpack.c.l.b16 %v110
    %v150 = vunpack.c.l.b16 %v111
    %v151 = vunpack.c.l.b16 %v112
    %v152 = vunpack.c.l.b16 %v113
    %v153 = vunpack.c.l.b16 %v114
    %v154 = vunpack.c.l.b16 %v115
    %v155 = vunpack.c.l.b16 %v116
    %v156 = vunpack.c.l.b16 %v117
    %v157 = vunpack.c.l.b16 %v118
    %v158 = vpack.c.b16 %v143, %v142
    %v159 = vpack.c.b16 %v145, %v144
    %v160 = vpack.c.b16 %v147, %v146
    %v161 = vpack.c.b16 %v149, %v148
    %v162 = vpack.c.b16 %v151, %v150
    %v163 = vpack.c.b16 %v153, %v152
    %v164 = vpack.c.b16 %v155, %v154
    %v165 = vpack.c.b16 %v157, %v156
    %174 = vmatprep.subr.bf16.mxu0 0
    %175 = vmatpush1.bf16.msra.mxu0 %v158
    %176 = vmatprep.subr.bf16.mxu0 0
    %177 = vmatpush1.bf16.msra.mxu0 %v159
    %178 = vmatprep.subr.bf16.mxu0 0
    %179 = vmatpush1.bf16.msra.mxu0 %v160
    %180 = vmatprep.subr.bf16.mxu0 0
    %181 = vmatpush1.bf16.msra.mxu0 %v161
    %182 = vmatprep.subr.bf16.mxu0 0
    %183 = vmatpush1.bf16.msra.mxu0 %v162
    %184 = vmatprep.subr.bf16.mxu0 0
    %185 = vmatpush1.bf16.msra.mxu0 %v163
    %186 = vmatprep.subr.bf16.mxu0 0
    %187 = vmatpush1.bf16.msra.mxu0 %v164
    %188 = vmatprep.subr.bf16.mxu0 0
    %189 = vmatpush1.bf16.msra.mxu0 %v165
    %190 = vmatprep.subr.bf16.mxu0 0
    %191 = vmatpush1.bf16.msra.mxu0 0
    %192 = vmatprep.subr.bf16.mxu0 0
    %193 = vmatpush1.bf16.msra.mxu0 0
    %194 = vmatprep.subr.bf16.mxu0 0
    %195 = vmatpush1.bf16.msra.mxu0 0
    %196 = vmatprep.subr.bf16.mxu0 0
    %197 = vmatpush1.bf16.msra.mxu0 0
    %198 = vmatprep.subr.bf16.mxu0 0
    %199 = vmatpush1.bf16.msra.mxu0 0
    %200 = vmatprep.subr.bf16.mxu0 0
    %201 = vmatpush1.bf16.msra.mxu0 0
    %202 = vmatprep.subr.bf16.mxu0 0
    %203 = vmatpush1.bf16.msra.mxu0 0
    %204 = vmatprep.subr.bf16.mxu0 0
    %205 = vmatpush1.bf16.msra.mxu0 0
    %206 = vmatprep.mubr.bf16.mxu0 0
    %207 = vmatmul.mubr.bf16.gmra.mrb[0].mxu0 %v102
    %v208 = vpop.f32.mrb[0].mxu0
    %v209 = vadd.f32 %v124, %v208
    %v210 = vpop.f32.mrb[0].mxu0
    %v211 = vpop.f32.mrb[0].mxu0
    %v212 = vpop.f32.mrb[0].mxu0
    %213 = vdwg.mxu0
    %v214 = vmax.f32 %v209, 0.0
    %v215 = vpack.c.bf16 %v214, %v214
    %v216 = vld [vmem:[#allocation10] sm:$0xff]
    %v217 = vld [vmem:[#allocation10 + $0x8] sm:$0xff]
    %v218 = vld [vmem:[#allocation10 + $0x10] sm:$0xff]
    %v219 = vld [vmem:[#allocation10 + $0x18] sm:$0xff]
    %v220 = vld [vmem:[#allocation10 + $0x20] sm:$0xff]
    %v221 = vld [vmem:[#allocation10 + $0x28] sm:$0xff]
    %v222 = vld [vmem:[#allocation10 + $0x30] sm:$0xff]
    %v223 = vld [vmem:[#allocation10 + $0x38] sm:$0xff]
    %v224 = vld [vmem:[#allocation10 + $0x40] sm:$0xff]
    %v225 = vld [vmem:[#allocation10 + $0x48] sm:$0xff]
    %v226 = vld [vmem:[#allocation10 + $0x50] sm:$0xff]
    %v227 = vld [vmem:[#allocation10 + $0x58] sm:$0xff]
    %v228 = vld [vmem:[#allocation10 + $0x60] sm:$0xff]
    %v229 = vld [vmem:[#allocation10 + $0x68] sm:$0xff]
    %v230 = vld [vmem:[#allocation10 + $0x70] sm:$0xff]
    %v231 = vld [vmem:[#allocation10 + $0x78] sm:$0xff]
    %v232 = vld [vmem:[#allocation11] sm:$0x3]
    %v234 = vlaneseq
    %v235 = vshrl.u32 %v234, 7
    %v236 = vsub.s32 0, %v235
    %v237 = vrot.slane %v232, %v236
    %v238 = vlaneseq
    %v239 = vshrl.u32 %v238, 7
    %v240 = vsub.s32 1, %v239
    %v241 = vrot.slane %v232, %v240
    %v260 = vunpack.c.l.b16 %v216
    %v261 = vunpack.c.h.b16 %v216
    %v262 = vunpack.c.l.b16 %v217
    %v263 = vunpack.c.h.b16 %v217
    %v264 = vunpack.c.l.b16 %v218
    %v265 = vunpack.c.h.b16 %v218
    %v266 = vunpack.c.l.b16 %v219
    %v267 = vunpack.c.h.b16 %v219
    %v268 = vunpack.c.l.b16 %v220
    %v269 = vunpack.c.h.b16 %v220
    %v270 = vunpack.c.l.b16 %v221
    %v271 = vunpack.c.h.b16 %v221
    %v272 = vunpack.c.l.b16 %v222
    %v273 = vunpack.c.h.b16 %v222
    %v274 = vunpack.c.l.b16 %v223
    %v275 = vunpack.c.h.b16 %v223
    %v276 = vunpack.c.l.b16 %v224
    %v277 = vunpack.c.h.b16 %v224
    %v278 = vunpack.c.l.b16 %v225
    %v279 = vunpack.c.h.b16 %v225
    %v280 = vunpack.c.l.b16 %v226
    %v281 = vunpack.c.h.b16 %v226
    %v282 = vunpack.c.l.b16 %v227
    %v283 = vunpack.c.h.b16 %v227
    %v284 = vunpack.c.l.b16 %v228
    %v285 = vunpack.c.h.b16 %v228
    %v286 = vunpack.c.l.b16 %v229
    %v287 = vunpack.c.h.b16 %v229
    %v288 = vunpack.c.l.b16 %v230
    %v289 = vunpack.c.h.b16 %v230
    %v290 = vunpack.c.l.b16 %v231
    %v291 = vunpack.c.h.b16 %v231
    %v292 = vpack.c.b16 %v262, %v260
    %v293 = vpack.c.b16 %v263, %v261
    %v294 = vpack.c.b16 %v266, %v264
    %v295 = vpack.c.b16 %v267, %v265
    %v296 = vpack.c.b16 %v270, %v268
    %v297 = vpack.c.b16 %v271, %v269
    %v298 = vpack.c.b16 %v274, %v272
    %v299 = vpack.c.b16 %v275, %v273
    %v300 = vpack.c.b16 %v278, %v276
    %v301 = vpack.c.b16 %v279, %v277
    %v302 = vpack.c.b16 %v282, %v280
    %v303 = vpack.c.b16 %v283, %v281
    %v304 = vpack.c.b16 %v286, %v284
    %v305 = vpack.c.b16 %v287, %v285
    %v306 = vpack.c.b16 %v290, %v288
    %v307 = vpack.c.b16 %v291, %v289
    %324 = vmatprep.subr.bf16.mxu0 %v293
    %325 = vmatpush1.bf16.msra.mxu0 %v292
    %326 = vmatprep.subr.bf16.mxu0 %v295
    %327 = vmatpush1.bf16.msra.mxu0 %v294
    %328 = vmatprep.subr.bf16.mxu0 %v297
    %329 = vmatpush1.bf16.msra.mxu0 %v296
    %330 = vmatprep.subr.bf16.mxu0 %v299
    %331 = vmatpush1.bf16.msra.mxu0 %v298
    %332 = vmatprep.subr.bf16.mxu0 %v301
    %333 = vmatpush1.bf16.msra.mxu0 %v300
    %334 = vmatprep.subr.bf16.mxu0 %v303
    %335 = vmatpush1.bf16.msra.mxu0 %v302
    %336 = vmatprep.subr.bf16.mxu0 %v305
    %337 = vmatpush1.bf16.msra.mxu0 %v304
    %338 = vmatprep.subr.bf16.mxu0 %v307
    %339 = vmatpush1.bf16.msra.mxu0 %v306
    %340 = vmatprep.subr.bf16.mxu0 0
    %341 = vmatpush1.bf16.msra.mxu0 0
    %342 = vmatprep.subr.bf16.mxu0 0
    %343 = vmatpush1.bf16.msra.mxu0 0
    %344 = vmatprep.subr.bf16.mxu0 0
    %345 = vmatpush1.bf16.msra.mxu0 0
    %346 = vmatprep.subr.bf16.mxu0 0
    %347 = vmatpush1.bf16.msra.mxu0 0
    %348 = vmatprep.subr.bf16.mxu0 0
    %349 = vmatpush1.bf16.msra.mxu0 0
    %350 = vmatprep.subr.bf16.mxu0 0
    %351 = vmatpush1.bf16.msra.mxu0 0
    %352 = vmatprep.subr.bf16.mxu0 0
    %353 = vmatpush1.bf16.msra.mxu0 0
    %354 = vmatprep.subr.bf16.mxu0 0
    %355 = vmatpush1.bf16.msra.mxu0 0
    %356 = vmatprep.mubr.bf16.mxu0 0
    %357 = vmatmul.mubr.bf16.gmra.mrb[0].mxu0 %v215
    %v358 = vpop.f32.mrb[0].mxu0
    %v359 = vadd.f32 %v237, %v358
    %v360 = vpop.f32.mrb[0].mxu0
    %v361 = vadd.f32 %v241, %v360
    %v362 = vpop.f32.mrb[0].mxu0
    %v363 = vpop.f32.mrb[0].mxu0
    %364 = vdwg.mxu0
    %v365 = vmul.f32 %v361, 0.5
    %v366 = vmul.f32 %v365, 1.442695
    %v367 = vpow.pop %v366
    %v368 = vld [vmem:[#allocation5] sm:$0xff]
    %v369 = vmul.f32 %v368, %v367
    %v370 = vadd.f32 %v369, %v359
    %371 = vst [vmem:[#allocation13] sm:$0xff] %v370
    %v372 = vadd.f32 %v361, 1.0
    %v373 = vmul.f32 %v359, %v359
    %v374 = vsub.f32 %v372, %v373
    %v375 = vmul.f32 %v367, %v367
    %v376 = vsub.f32 %v374, %v375
    %377 = vst [vmem:[#allocation14] sm:$0xff] %v376
    // Predicated region
    $region50: #{sampler_forward.1} parent=1 // pred_check
      _
    $region51: #{sampler_forward.1} parent=1 // pred_check_branch
      %379 = sbr.rel (0) target = $region53
    $region52: #{sampler_forward.1} parent=1 // pred_region
      %s381 = ssub.s32 128, 128
      %382 = vsyncadd [#allocation4], %s381
      %s384 = sshll.u32 [#allocation13], 4
      %s385 = int_to_ptr.vmem [resolvable:$true] %s384
      %387 = dma.vmem_to_hbm [thread:$0]  %s385, 128, %s6, [#allocation4]
    $region53: #{sampler_forward.1} parent=1 // pred_fallthru
      _
    // Predicated region
    $region54: #{sampler_forward.1} parent=1 // pred_check
      _
    $region55: #{sampler_forward.1} parent=1 // pred_check_branch
      %389 = sbr.rel (0) target = $region57
    $region56: #{sampler_forward.1} parent=1 // pred_region
      %s391 = ssub.s32 128, 128
      %392 = vsyncadd [#allocation15], %s391
      %s394 = sshll.u32 [#allocation14], 4
      %s395 = int_to_ptr.vmem [resolvable:$true] %s394
      %397 = dma.vmem_to_hbm [thread:$0]  %s395, 128, %s7, [#allocation15]
    $region57: #{sampler_forward.1} parent=1 // pred_fallthru
      _
    // Predicated region
    $region58: #{sampler_forward.1} parent=1 // pred_check
      _
    $region59: #{sampler_forward.1} parent=1 // pred_check_branch
      %399 = sbr.rel (0) target = $region61
    $region60: #{sampler_forward.1} parent=1 // pred_region
      %400 = dma.done [#allocation4], 128
    $region61: #{sampler_forward.1} parent=1 // pred_fallthru
      _
    // Predicated region
    $region62: #{sampler_forward.1} parent=1 // pred_check
      _
    $region63: #{sampler_forward.1} parent=1 // pred_check_branch
      %402 = sbr.rel (0) target = $region65
    $region64: #{sampler_forward.1} parent=1 // pred_region
      %403 = dma.done [#allocation15], 128
    $region65: #{sampler_forward.1} parent=1 // pred_fallthru
      _
    %404 = vsyncpa [#allocation3], 1
    %405 = vsyncpa [#allocation6], 1
    %406 = vsyncpa [#allocation9], 1
    %407 = vsyncpa [#allocation12], 1
    %408 = vsyncpa [#allocation4], 1
    %409 = vsyncpa [#allocation15], 1

</llo_original>
